<compile_context>
chip_gen: v7x
topology: tpu7x:2x2x1
jax: 0.10.0
libtpu: 0.0.40
codegen_flags: <defaults>
</compile_context>

<pallas_src>
import jax
import jax.numpy as jnp
from jax.experimental import pallas as pl
from jax.experimental.pallas import tpu as pltpu

NUM = 50
H1, H2, H3 = 100, 150, 100
LANE = 128


def _round_up(x, m):
    return ((x + m - 1) // m) * m


def _cdiv(a, b):
    return (a + b - 1) // b


# Lane-dense (padded) hidden widths.  The input (50) and output (50) feature
# dims are NOT padded: the input block is (tile, 50) and the output block is
# (tile, 50) (full last dim), so the wrapper needs no pad/cast pass before the
# kernel and no column-slice pass after it.
D1 = _round_up(H1, LANE)    # 100 -> 128
D2 = _round_up(H2, LANE)    # 150 -> 256
D3 = _round_up(H3, LANE)    # 100 -> 128


def mlp_kernel(x_ref,
               w1_ref, b1_ref,
               w2_ref, b2_ref,
               w3_ref, b3_ref,
               w4_ref, b4_ref,
               o_ref):
    # x arrives f32 and is cast to bf16 in-kernel.  Every matmul accumulates
    # in f32 on the MXU; bias-add and tanh stay f32 for accuracy (and v5e has
    # no bf16 VPU/EUP anyway).
    x = x_ref[...].astype(jnp.bfloat16)                       # (tile, 50)
    h = jnp.tanh(jnp.dot(x, w1_ref[...],
                         preferred_element_type=jnp.float32) + b1_ref[...])
    h = jnp.tanh(jnp.dot(h.astype(jnp.bfloat16), w2_ref[...],
                         preferred_element_type=jnp.float32) + b2_ref[...])
    h = jnp.tanh(jnp.dot(h.astype(jnp.bfloat16), w3_ref[...],
                         preferred_element_type=jnp.float32) + b3_ref[...])
    h = jnp.tanh(jnp.dot(h.astype(jnp.bfloat16), w4_ref[...],
                         preferred_element_type=jnp.float32) + b4_ref[...])
    o_ref[...] = h.astype(o_ref.dtype)                        # (tile, 50)


def _pad2(a, rows, cols):
    return jnp.pad(a, ((0, rows - a.shape[0]), (0, cols - a.shape[1])))


def prepare_padded_params(params):
    """Zero-pad hidden dims to lane multiples; weights -> bf16, biases -> f32.

    Zero padding is mathematically a no-op: padded weight rows/cols and bias
    entries are 0 and tanh(0) = 0, so padded activation lanes stay 0 and never
    contaminate real columns.  w1 keeps its input dim at 50 (contracted
    directly against the unpadded x) and w4 keeps its output dim at 50 (the
    kernel writes the real 50-wide output block directly).
    """
    dims = [(NUM, NUM, H1, D1),   # w1: K stays 50,   N 100 -> 128
            (H1, D1, H2, D2),     # w2: K 100 -> 128, N 150 -> 256
            (H2, D2, H3, D3),     # w3: K 150 -> 256, N 100 -> 128
            (H3, D3, NUM, NUM)]   # w4: K 100 -> 128, N stays 50
    out = {}
    for i, (fin, fin_p, fout, fout_p) in enumerate(dims, start=1):
        out[f"w{i}"] = _pad2(params[f"w{i}"], fin_p, fout_p).astype(jnp.bfloat16)
        out[f"b{i}"] = _pad2(params[f"b{i}"], 1, fout_p)  # stays float32
    return out


def net_forward(x, params, *, tile_b=1024, out_dtype=jnp.bfloat16):
    """x: (B, NUM) float32; params: dict of (in,out) weights and (1,out) biases."""
    B = x.shape[0]
    pp = prepare_padded_params(params)

    # Batch tiling:
    #   * >= 2 grid steps whenever there are >= 16 rows (v7x megacore),
    #   * tile = round_up(cdiv(B, n_steps), 8) bounds padding waste,
    #   * tile capped at tile_b (1024 rows -> ~0.4 GFLOP and a few MiB of VMEM
    #     per step: overhead-free and far under even v7x's 64 MiB VMEM).
    b8 = _round_up(max(B, 8), 8)
    n_steps = max(_cdiv(b8, tile_b), 2 if b8 >= 16 else 1)
    tile = _round_up(_cdiv(b8, n_steps), 8)
    b_pad = _round_up(b8, tile)
    grid_b = b_pad // tile

    # Row-only padding (no column pad, no dtype cast); a no-op when B already
    # fills the grid exactly.
    xp = x if b_pad == B else jnp.pad(x, ((0, b_pad - B), (0, 0)))

    # Weights/biases: full block with constant index_map -> VMEM-resident.
    resident = lambda a: pl.BlockSpec(a.shape, lambda i: (0, 0))

    flops = 2 * b_pad * (NUM * D1 + D1 * D2 + D2 * D3 + D3 * NUM)
    transcendentals = b_pad * (D1 + D2 + D3 + NUM)
    weight_bytes = sum(int(v.size) * v.dtype.itemsize for v in pp.values())
    bytes_accessed = (b_pad * NUM * 4
                      + b_pad * NUM * jnp.dtype(out_dtype).itemsize
                      + weight_bytes)

    out = pl.pallas_call(
        mlp_kernel,
        out_shape=jax.ShapeDtypeStruct((b_pad, NUM), out_dtype),
        grid=(grid_b,),
        in_specs=[pl.BlockSpec((tile, NUM), lambda i: (i, 0)),
                  resident(pp["w1"]), resident(pp["b1"]),
                  resident(pp["w2"]), resident(pp["b2"]),
                  resident(pp["w3"]), resident(pp["b3"]),
                  resident(pp["w4"]), resident(pp["b4"])],
        out_specs=pl.BlockSpec((tile, NUM), lambda i: (i, 0)),
        compiler_params=pltpu.CompilerParams(
            dimension_semantics=("parallel",)),
        cost_estimate=pl.CostEstimate(
            flops=flops,
            transcendentals=transcendentals,
            bytes_accessed=bytes_accessed),
    )(xp, pp["w1"], pp["b1"], pp["w2"], pp["b2"],
      pp["w3"], pp["b3"], pp["w4"], pp["b4"])

    return out if b_pad == B else out[:B]


def init_params(key):
    """PyTorch default Linear init: U(-1/sqrt(fan_in), 1/sqrt(fan_in)).
    Weights stored as (in, out) so the kernel does plain x @ W + b."""
    dims = [(NUM, H1), (H1, H2), (H2, H3), (H3, NUM)]
    params = {}
    for i, (fan_in, fan_out) in enumerate(dims, start=1):
        key, kw, kb = jax.random.split(key, 3)
        bound = 1.0 / jnp.sqrt(float(fan_in))
        params[f"w{i}"] = jax.random.uniform(
            kw, (fan_in, fan_out), jnp.float32, minval=-bound, maxval=bound)
        params[f"b{i}"] = jax.random.uniform(
            kb, (1, fan_out), jnp.float32, minval=-bound, maxval=bound)
    return params


def reference_forward_f32(x, params):
    h = jnp.tanh(x @ params["w1"] + params["b1"])
    h = jnp.tanh(h @ params["w2"] + params["b2"])
    h = jnp.tanh(h @ params["w3"] + params["b3"])
    h = jnp.tanh(h @ params["w4"] + params["b4"])
    return h


def reference_forward_bf16(x, params, out_dtype=jnp.bfloat16):
    """Emulates the kernel's numerics (bf16 inputs/weights, f32 accumulation
    and tanh, bf16 output)."""
    pp = prepare_padded_params(params)
    h = x.astype(jnp.bfloat16)
    for i in range(1, 5):
        h = jnp.tanh(jnp.dot(h, pp[f"w{i}"],
                             preferred_element_type=jnp.float32) + pp[f"b{i}"])
        if i < 4:
            h = h.astype(jnp.bfloat16)
    return h[:, :NUM].astype(out_dtype)


if __name__ == "__main__":
    key = jax.random.PRNGKey(0)
    key, kx = jax.random.split(key)

    batch = 16  # small, but >= 16 so the grid has 2 steps (megacore path exercised)
    x = jax.random.normal(kx, (batch, NUM), jnp.float32)
    params = init_params(key)

    out = net_forward(x, params)
    out = jax.block_until_ready(out)
    assert out.shape == (batch, NUM)
    assert out.dtype == jnp.bfloat16

    out_f32 = out.astype(jnp.float32)

    # Tight check vs. a reference that matches the kernel's bf16/f32 numerics
    # (tolerance ~ one bf16 ulp near 1.0 absorbs tanh-impl rounding diffs).
    ref_bf16 = reference_forward_bf16(x, params).astype(jnp.float32)
    assert jnp.allclose(out_f32, ref_bf16, atol=1e-2, rtol=1e-2), \
        "mismatch vs bf16-emulating reference"

    # Loose check vs. the pure-f32 PyTorch-equivalent forward.
    ref_f32 = reference_forward_f32(x, params)
    assert jnp.allclose(out_f32, ref_f32, atol=5e-2, rtol=5e-2), \
        "mismatch vs float32 reference"

    print("KERNEL_OK")
</pallas_src>

<mosaic_0001>
module attributes {stable_mosaic.version = 11 : i64} {
  func.func @mlp_kernel(%arg0: i32, %arg1: memref<8x50xf32, #tpu.memory_space<vmem>>, %arg2: memref<50x128xbf16, #tpu.memory_space<vmem>>, %arg3: memref<1x128xf32, #tpu.memory_space<vmem>>, %arg4: memref<128x256xbf16, #tpu.memory_space<vmem>>, %arg5: memref<1x256xf32, #tpu.memory_space<vmem>>, %arg6: memref<256x128xbf16, #tpu.memory_space<vmem>>, %arg7: memref<1x128xf32, #tpu.memory_space<vmem>>, %arg8: memref<128x50xbf16, #tpu.memory_space<vmem>>, %arg9: memref<1x50xf32, #tpu.memory_space<vmem>>, %arg10: memref<8x50xbf16, #tpu.memory_space<vmem>>) attributes {dimension_semantics = [#tpu.dimension_semantics<parallel>], iteration_bounds = array<i64: 2>, scalar_prefetch = 0 : i64, scratch_operands = 0 : i64, tpu.core_type = #tpu.core_type<tc>, window_params = [{transform_indices = @transform_0, window_bounds = array<i64: 8, 50>}, {pipeline_mode = #tpu.pipeline_mode<synchronous>, transform_indices = @transform_1, window_bounds = array<i64: 50, 128>}, {pipeline_mode = #tpu.pipeline_mode<synchronous>, transform_indices = @transform_2, window_bounds = array<i64: 1, 128>}, {pipeline_mode = #tpu.pipeline_mode<synchronous>, transform_indices = @transform_3, window_bounds = array<i64: 128, 256>}, {pipeline_mode = #tpu.pipeline_mode<synchronous>, transform_indices = @transform_4, window_bounds = array<i64: 1, 256>}, {pipeline_mode = #tpu.pipeline_mode<synchronous>, transform_indices = @transform_5, window_bounds = array<i64: 256, 128>}, {pipeline_mode = #tpu.pipeline_mode<synchronous>, transform_indices = @transform_6, window_bounds = array<i64: 1, 128>}, {pipeline_mode = #tpu.pipeline_mode<synchronous>, transform_indices = @transform_7, window_bounds = array<i64: 128, 50>}, {pipeline_mode = #tpu.pipeline_mode<synchronous>, transform_indices = @transform_8, window_bounds = array<i64: 1, 50>}, {transform_indices = @transform_9, window_bounds = array<i64: 8, 50>}]} {
    %c0 = arith.constant 0 : index
    %c0_0 = arith.constant 0 : index
    %0 = vector.load %arg1[%c0, %c0_0] : memref<8x50xf32, #tpu.memory_space<vmem>>, vector<8x50xf32>
    %1 = arith.truncf %0 : vector<8x50xf32> to vector<8x50xbf16>
    %c0_1 = arith.constant 0 : index
    %c0_2 = arith.constant 0 : index
    %2 = vector.load %arg2[%c0_1, %c0_2] : memref<50x128xbf16, #tpu.memory_space<vmem>>, vector<50x128xbf16>
    %cst = arith.constant dense<0.000000e+00> : vector<8x128xf32>
    %3 = tpu.matmul %1, %2, %cst {dimension_numbers = #tpu.dot_dimension_numbers<[1], [0], [0], [1], [0, 0, 1, 1], [], []>} : vector<8x50xbf16>, vector<50x128xbf16>, vector<8x128xf32> -> vector<8x128xf32>
    %c0_3 = arith.constant 0 : index
    %c0_4 = arith.constant 0 : index
    %4 = vector.load %arg3[%c0_3, %c0_4] : memref<1x128xf32, #tpu.memory_space<vmem>>, vector<1x128xf32>
    %5 = vector.broadcast %4 : vector<1x128xf32> to vector<8x128xf32>
    %6 = arith.addf %3, %5 : vector<8x128xf32>
    %7 = math.tanh %6 : vector<8x128xf32>
    %8 = arith.truncf %7 : vector<8x128xf32> to vector<8x128xbf16>
    %c0_5 = arith.constant 0 : index
    %c0_6 = arith.constant 0 : index
    %9 = vector.load %arg4[%c0_5, %c0_6] : memref<128x256xbf16, #tpu.memory_space<vmem>>, vector<128x256xbf16>
    %cst_7 = arith.constant dense<0.000000e+00> : vector<8x256xf32>
    %10 = tpu.matmul %8, %9, %cst_7 {dimension_numbers = #tpu.dot_dimension_numbers<[1], [0], [0], [1], [0, 0, 1, 1], [], []>} : vector<8x128xbf16>, vector<128x256xbf16>, vector<8x256xf32> -> vector<8x256xf32>
    %c0_8 = arith.constant 0 : index
    %c0_9 = arith.constant 0 : index
    %11 = vector.load %arg5[%c0_8, %c0_9] : memref<1x256xf32, #tpu.memory_space<vmem>>, vector<1x256xf32>
    %12 = vector.broadcast %11 : vector<1x256xf32> to vector<8x256xf32>
    %13 = arith.addf %10, %12 : vector<8x256xf32>
    %14 = math.tanh %13 : vector<8x256xf32>
    %15 = arith.truncf %14 : vector<8x256xf32> to vector<8x256xbf16>
    %c0_10 = arith.constant 0 : index
    %c0_11 = arith.constant 0 : index
    %16 = vector.load %arg6[%c0_10, %c0_11] : memref<256x128xbf16, #tpu.memory_space<vmem>>, vector<256x128xbf16>
    %cst_12 = arith.constant dense<0.000000e+00> : vector<8x128xf32>
    %17 = tpu.matmul %15, %16, %cst_12 {dimension_numbers = #tpu.dot_dimension_numbers<[1], [0], [0], [1], [0, 0, 1, 1], [], []>} : vector<8x256xbf16>, vector<256x128xbf16>, vector<8x128xf32> -> vector<8x128xf32>
    %c0_13 = arith.constant 0 : index
    %c0_14 = arith.constant 0 : index
    %18 = vector.load %arg7[%c0_13, %c0_14] : memref<1x128xf32, #tpu.memory_space<vmem>>, vector<1x128xf32>
    %19 = vector.broadcast %18 : vector<1x128xf32> to vector<8x128xf32>
    %20 = arith.addf %17, %19 : vector<8x128xf32>
    %21 = math.tanh %20 : vector<8x128xf32>
    %22 = arith.truncf %21 : vector<8x128xf32> to vector<8x128xbf16>
    %c0_15 = arith.constant 0 : index
    %c0_16 = arith.constant 0 : index
    %23 = vector.load %arg8[%c0_15, %c0_16] : memref<128x50xbf16, #tpu.memory_space<vmem>>, vector<128x50xbf16>
    %cst_17 = arith.constant dense<0.000000e+00> : vector<8x50xf32>
    %24 = tpu.matmul %22, %23, %cst_17 {dimension_numbers = #tpu.dot_dimension_numbers<[1], [0], [0], [1], [0, 0, 1, 1], [], []>} : vector<8x128xbf16>, vector<128x50xbf16>, vector<8x50xf32> -> vector<8x50xf32>
    %c0_18 = arith.constant 0 : index
    %c0_19 = arith.constant 0 : index
    %25 = vector.load %arg9[%c0_18, %c0_19] : memref<1x50xf32, #tpu.memory_space<vmem>>, vector<1x50xf32>
    %26 = vector.broadcast %25 : vector<1x50xf32> to vector<8x50xf32>
    %27 = arith.addf %24, %26 : vector<8x50xf32>
    %28 = math.tanh %27 : vector<8x50xf32>
    %29 = arith.truncf %28 : vector<8x50xf32> to vector<8x50xbf16>
    %c0_20 = arith.constant 0 : index
    %c0_21 = arith.constant 0 : index
    %30 = vector.load %arg10[%c0_20, %c0_21] : memref<8x50xbf16, #tpu.memory_space<vmem>>, vector<8x50xbf16>
    tpu.vector_store %arg10[%c0_20, %c0_21], %29 {strides = array<i32>} : memref<8x50xbf16, #tpu.memory_space<vmem>>, vector<8x50xbf16>,
    return
  }
  func.func @transform_0(%arg0: i32) -> (i32, i32) {
    %c0_i32 = arith.constant 0 : i32
    %c0_i32_0 = arith.constant 0 : i32
    return %arg0, %c0_i32 : i32, i32
  }
  func.func @transform_1(%arg0: i32) -> (i32, i32) {
    %c0_i32 = arith.constant 0 : i32
    %c0_i32_0 = arith.constant 0 : i32
    %c0_i32_1 = arith.constant 0 : i32
    return %c0_i32, %c0_i32_0 : i32, i32
  }
  func.func @transform_2(%arg0: i32) -> (i32, i32) {
    %c0_i32 = arith.constant 0 : i32
    %c0_i32_0 = arith.constant 0 : i32
    %c0_i32_1 = arith.constant 0 : i32
    return %c0_i32, %c0_i32_0 : i32, i32
  }
  func.func @transform_3(%arg0: i32) -> (i32, i32) {
    %c0_i32 = arith.constant 0 : i32
    %c0_i32_0 = arith.constant 0 : i32
    %c0_i32_1 = arith.constant 0 : i32
    return %c0_i32, %c0_i32_0 : i32, i32
  }
  func.func @transform_4(%arg0: i32) -> (i32, i32) {
    %c0_i32 = arith.constant 0 : i32
    %c0_i32_0 = arith.constant 0 : i32
    %c0_i32_1 = arith.constant 0 : i32
    return %c0_i32, %c0_i32_0 : i32, i32
  }
  func.func @transform_5(%arg0: i32) -> (i32, i32) {
    %c0_i32 = arith.constant 0 : i32
    %c0_i32_0 = arith.constant 0 : i32
    %c0_i32_1 = arith.constant 0 : i32
    return %c0_i32, %c0_i32_0 : i32, i32
  }
  func.func @transform_6(%arg0: i32) -> (i32, i32) {
    %c0_i32 = arith.constant 0 : i32
    %c0_i32_0 = arith.constant 0 : i32
    %c0_i32_1 = arith.constant 0 : i32
    return %c0_i32, %c0_i32_0 : i32, i32
  }
  func.func @transform_7(%arg0: i32) -> (i32, i32) {
    %c0_i32 = arith.constant 0 : i32
    %c0_i32_0 = arith.constant 0 : i32
    %c0_i32_1 = arith.constant 0 : i32
    return %c0_i32, %c0_i32_0 : i32, i32
  }
  func.func @transform_8(%arg0: i32) -> (i32, i32) {
    %c0_i32 = arith.constant 0 : i32
    %c0_i32_0 = arith.constant 0 : i32
    %c0_i32_1 = arith.constant 0 : i32
    return %c0_i32, %c0_i32_0 : i32, i32
  }
  func.func @transform_9(%arg0: i32) -> (i32, i32) {
    %c0_i32 = arith.constant 0 : i32
    %c0_i32_0 = arith.constant 0 : i32
    return %arg0, %c0_i32 : i32, i32
  }
}

</mosaic_0001>

<llo_original>
// kernel: tpu_custom_call.1
$region0: #{tpu_custom_call.1}
  #allocation0 [shape = 'u32[]', space=smem, size = 0x4, offset = 0x4, fixed_abs, tag = 'smem constant byte address 0x4 - core index']
  #allocation1 [shape = 'u32[144,128]{1,0:T(1,128)}', space=vmem, size = 0x12000, scoped, tag = 'internal scratch']
  %s0 = inlined_call_operand.vmem [shape: f32[16,50], index: 0, kind: input, shape index: {}]
  %s1 = inlined_call_operand.vmem [shape: bf16[50,128], index: 1, kind: input, shape index: {}]
  %s2 = inlined_call_operand.vmem [shape: f32[1,128], index: 2, kind: input, shape index: {}]
  %s3 = inlined_call_operand.hbm [shape: bf16[128,256], index: 3, kind: input, shape index: {}]
  %s4 = inlined_call_operand.vmem [shape: f32[1,256], index: 4, kind: input, shape index: {}]
  %s5 = inlined_call_operand.hbm [shape: bf16[256,128], index: 5, kind: input, shape index: {}]
  %s6 = inlined_call_operand.vmem [shape: f32[1,128], index: 6, kind: input, shape index: {}]
  %s7 = inlined_call_operand.vmem [shape: bf16[128,50], index: 7, kind: input, shape index: {}]
  %s8 = inlined_call_operand.vmem [shape: f32[1,50], index: 8, kind: input, shape index: {}]
  %s9 = inlined_call_operand.hbm [shape: bf16[16,50], index: 9, kind: output, shape index: {}]
  %s10 = sld [smem:[#allocation0]]
  $region77: #{tpu_custom_call.1} parent=0
    _
  %s12 = ssub.s32 1, %s10
  %s13 = scalar_select 0, %s12, %s10
  $region1: #{tpu_custom_call.1} parent=0
    #allocation2 [shape = 'u8[65536]{0}', space=vmem, size = 0x10000, scoped, tag = 'input window, operand 3, single buffered']
    #allocation3 [shape = 's32[2]{0}', space=sflag, size = 0x8, scoped, tag = 'scoped memory for tpu_custom_call.1']
    #allocation4 [shape = 's32[2]{0}', space=sflag, size = 0x8, scoped, tag = 'scoped memory for tpu_custom_call.1']
    #allocation5 [shape = 'u8[65536]{0}', space=vmem, size = 0x10000, scoped, tag = 'input window, operand 5, single buffered']
    #allocation6 [shape = 's32[1]{0}', space=sflag, size = 0x4, scoped, tag = 'scoped memory for tpu_custom_call.1']
    #allocation7 [shape = 'u8[4096]{0}', space=vmem, size = 0x1000, scoped, tag = 'output window, operand 0']
    %14 = vsyncpa [#allocation3], 0
    %15 = vsyncpa [#allocation6], 0
    %16 = vsyncpa [#allocation4], 0
    %s17 = scalar_lea.sflag [#allocation4], 1
    %18 = vsyncpa %s17, 0
    loop: start=0, step=1, limit=4
    $region2: #{tpu_custom_call.1} parent=1 // loop_pre_header
      _
    $region3: #{tpu_custom_call.1} parent=1 // loop_header
      %s20 = sphi 0, %s24
      %p21 = scmp.ge.s32.totalorder %s20, 4
      %s30 = sphi 0, %s32
      %s33 = sphi 0, %s30
      %s34 = sphi 0, %s33
      %s50 = sphi 0, %s34
      %s54 = sphi 0, %s54
      %s56 = sphi 0, %s54
      %s57 = sphi 0, %s56
      %s71 = sphi 0, %s57
      %s75 = sphi 0, %s75
      %s77 = sphi 0, %s75
      %s78 = sphi 0, %s77
      %s92 = sphi 0, %s78
      %s96 = sphi 0, %s96
      %s98 = sphi 0, %s96
      %s99 = sphi 0, %s98
      %s113 = sphi 0, %s99
      %s117 = sphi 0, %s117
      %s119 = sphi 0, %s117
      %s120 = sphi 0, %s119
      %s134 = sphi 0, %s120
      %s138 = sphi 0, %s138
      %s140 = sphi 0, %s138
      %s141 = sphi 0, %s140
      %s155 = sphi 0, %s141
      %s159 = sphi 0, %s159
      %s161 = sphi 0, %s159
      %s162 = sphi 0, %s161
      %s176 = sphi 0, %s162
      %s180 = sphi 0, %s180
      %s182 = sphi 0, %s180
      %s183 = sphi 0, %s182
      %s197 = sphi 0, %s183
      %s201 = sphi 0, %s201
      %s203 = sphi 0, %s201
      %s204 = sphi 0, %s203
      %s218 = sphi 0, %s204
      %s224 = sphi 0, %s226
      %s227 = sphi 0, %s224
      %s228 = sphi 0, %s227
      %s244 = sphi 0, %s228
    $region4: #{tpu_custom_call.1} parent=1 // loop_header_branch
      %23 = sbr.rel (%p21) target = $region8
    $region5: #{tpu_custom_call.1} parent=1 // loop_body
      %s25 = ssub.s32 %s20, 1
      %s26 = ssub.s32 %s20, 2
      %s27 = sadd.s32 %s20, 1
      %s28 = ssub.s32 %s20, %s27
      %p29 = scmp.eq.s32.totalorder %s28, 0
      %s31 = sadd.s32 %s30, 1
      %s32 = scalar_select %p29, %s30, %s31
      %p35 = pneg %p29
      %p36 = scmp.eq.s32.totalorder %s20, 1
      %p37 = por %p35, %p36
      %p38 = scmp.ne.s32.totalorder %s30, %s33
      %p39 = scmp.eq.s32.totalorder %s20, 0
      %p40 = por %p38, %p39
      %p41 = scmp.ne.s32.totalorder %s30, %s33
      %p42 = scmp.eq.s32.totalorder %s25, 1
      %p43 = por %p41, %p42
      %p44 = scmp.ne.s32.totalorder %s33, %s34
      %p45 = scmp.eq.s32.totalorder %s25, 0
      %p46 = por %p44, %p45
      %p47 = scmp.ne.s32.totalorder %s33, %s34
      %p48 = scmp.eq.s32.totalorder %s26, 1
      %p49 = por %p47, %p48
      %p51 = scmp.ne.s32.totalorder %s34, %s50
      %p52 = scmp.eq.s32.totalorder %s26, 0
      %p53 = por %p51, %p52
      %s55 = sadd.s32 %s54, 1
      %p58 = scmp.eq.s32.totalorder %s20, 1
      %p59 = scmp.ne.s32.totalorder %s54, %s56
      %p60 = scmp.eq.s32.totalorder %s20, 0
      %p61 = por %p59, %p60
      %p62 = scmp.ne.s32.totalorder %s54, %s56
      %p63 = scmp.eq.s32.totalorder %s25, 1
      %p64 = por %p62, %p63
      %p65 = scmp.ne.s32.totalorder %s56, %s57
      %p66 = scmp.eq.s32.totalorder %s25, 0
      %p67 = por %p65, %p66
      %p68 = scmp.ne.s32.totalorder %s56, %s57
      %p69 = scmp.eq.s32.totalorder %s26, 1
      %p70 = por %p68, %p69
      %p72 = scmp.ne.s32.totalorder %s57, %s71
      %p73 = scmp.eq.s32.totalorder %s26, 0
      %p74 = por %p72, %p73
      %s76 = sadd.s32 %s75, 1
      %p79 = scmp.eq.s32.totalorder %s20, 1
      %p80 = scmp.ne.s32.totalorder %s75, %s77
      %p81 = scmp.eq.s32.totalorder %s20, 0
      %p82 = por %p80, %p81
      %p83 = scmp.ne.s32.totalorder %s75, %s77
      %p84 = scmp.eq.s32.totalorder %s25, 1
      %p85 = por %p83, %p84
      %p86 = scmp.ne.s32.totalorder %s77, %s78
      %p87 = scmp.eq.s32.totalorder %s25, 0
      %p88 = por %p86, %p87
      %p89 = scmp.ne.s32.totalorder %s77, %s78
      %p90 = scmp.eq.s32.totalorder %s26, 1
      %p91 = por %p89, %p90
      %p93 = scmp.ne.s32.totalorder %s78, %s92
      %p94 = scmp.eq.s32.totalorder %s26, 0
      %p95 = por %p93, %p94
      %s97 = sadd.s32 %s96, 1
      %p100 = scmp.eq.s32.totalorder %s20, 1
      %p101 = scmp.ne.s32.totalorder %s96, %s98
      %p102 = scmp.eq.s32.totalorder %s20, 0
      %p103 = por %p101, %p102
      %p104 = scmp.ne.s32.totalorder %s96, %s98
      %p105 = scmp.eq.s32.totalorder %s25, 1
      %p106 = por %p104, %p105
      %p107 = scmp.ne.s32.totalorder %s98, %s99
      %p108 = scmp.eq.s32.totalorder %s25, 0
      %p109 = por %p107, %p108
      %p110 = scmp.ne.s32.totalorder %s98, %s99
      %p111 = scmp.eq.s32.totalorder %s26, 1
      %p112 = por %p110, %p111
      %p114 = scmp.ne.s32.totalorder %s99, %s113
      %p115 = scmp.eq.s32.totalorder %s26, 0
      %p116 = por %p114, %p115
      %s118 = sadd.s32 %s117, 1
      %p121 = scmp.eq.s32.totalorder %s20, 1
      %p122 = scmp.ne.s32.totalorder %s117, %s119
      %p123 = scmp.eq.s32.totalorder %s20, 0
      %p124 = por %p122, %p123
      %p125 = scmp.ne.s32.totalorder %s117, %s119
      %p126 = scmp.eq.s32.totalorder %s25, 1
      %p127 = por %p125, %p126
      %p128 = scmp.ne.s32.totalorder %s119, %s120
      %p129 = scmp.eq.s32.totalorder %s25, 0
      %p130 = por %p128, %p129
      %p131 = scmp.ne.s32.totalorder %s119, %s120
      %p132 = scmp.eq.s32.totalorder %s26, 1
      %p133 = por %p131, %p132
      %p135 = scmp.ne.s32.totalorder %s120, %s134
      %p136 = scmp.eq.s32.totalorder %s26, 0
      %p137 = por %p135, %p136
      %s139 = sadd.s32 %s138, 1
      %p142 = scmp.eq.s32.totalorder %s20, 1
      %p143 = scmp.ne.s32.totalorder %s138, %s140
      %p144 = scmp.eq.s32.totalorder %s20, 0
      %p145 = por %p143, %p144
      %p146 = scmp.ne.s32.totalorder %s138, %s140
      %p147 = scmp.eq.s32.totalorder %s25, 1
      %p148 = por %p146, %p147
      %p149 = scmp.ne.s32.totalorder %s140, %s141
      %p150 = scmp.eq.s32.totalorder %s25, 0
      %p151 = por %p149, %p150
      %p152 = scmp.ne.s32.totalorder %s140, %s141
      %p153 = scmp.eq.s32.totalorder %s26, 1
      %p154 = por %p152, %p153
      %p156 = scmp.ne.s32.totalorder %s141, %s155
      %p157 = scmp.eq.s32.totalorder %s26, 0
      %p158 = por %p156, %p157
      %s160 = sadd.s32 %s159, 1
      %p163 = scmp.eq.s32.totalorder %s20, 1
      %p164 = scmp.ne.s32.totalorder %s159, %s161
      %p165 = scmp.eq.s32.totalorder %s20, 0
      %p166 = por %p164, %p165
      %p167 = scmp.ne.s32.totalorder %s159, %s161
      %p168 = scmp.eq.s32.totalorder %s25, 1
      %p169 = por %p167, %p168
      %p170 = scmp.ne.s32.totalorder %s161, %s162
      %p171 = scmp.eq.s32.totalorder %s25, 0
      %p172 = por %p170, %p171
      %p173 = scmp.ne.s32.totalorder %s161, %s162
      %p174 = scmp.eq.s32.totalorder %s26, 1
      %p175 = por %p173, %p174
      %p177 = scmp.ne.s32.totalorder %s162, %s176
      %p178 = scmp.eq.s32.totalorder %s26, 0
      %p179 = por %p177, %p178
      %s181 = sadd.s32 %s180, 1
      %p184 = scmp.eq.s32.totalorder %s20, 1
      %p185 = scmp.ne.s32.totalorder %s180, %s182
      %p186 = scmp.eq.s32.totalorder %s20, 0
      %p187 = por %p185, %p186
      %p188 = scmp.ne.s32.totalorder %s180, %s182
      %p189 = scmp.eq.s32.totalorder %s25, 1
      %p190 = por %p188, %p189
      %p191 = scmp.ne.s32.totalorder %s182, %s183
      %p192 = scmp.eq.s32.totalorder %s25, 0
      %p193 = por %p191, %p192
      %p194 = scmp.ne.s32.totalorder %s182, %s183
      %p195 = scmp.eq.s32.totalorder %s26, 1
      %p196 = por %p194, %p195
      %p198 = scmp.ne.s32.totalorder %s183, %s197
      %p199 = scmp.eq.s32.totalorder %s26, 0
      %p200 = por %p198, %p199
      %s202 = sadd.s32 %s201, 1
      %p205 = scmp.eq.s32.totalorder %s20, 1
      %p206 = scmp.ne.s32.totalorder %s201, %s203
      %p207 = scmp.eq.s32.totalorder %s20, 0
      %p208 = por %p206, %p207
      %p209 = scmp.ne.s32.totalorder %s201, %s203
      %p210 = scmp.eq.s32.totalorder %s25, 1
      %p211 = por %p209, %p210
      %p212 = scmp.ne.s32.totalorder %s203, %s204
      %p213 = scmp.eq.s32.totalorder %s25, 0
      %p214 = por %p212, %p213
      %p215 = scmp.ne.s32.totalorder %s203, %s204
      %p216 = scmp.eq.s32.totalorder %s26, 1
      %p217 = por %p215, %p216
      %p219 = scmp.ne.s32.totalorder %s204, %s218
      %p220 = scmp.eq.s32.totalorder %s26, 0
      %p221 = por %p219, %p220
      %s222 = ssub.s32 %s20, %s27
      %p223 = scmp.eq.s32.totalorder %s222, 0
      %s225 = sadd.s32 %s224, 1
      %s226 = scalar_select %p223, %s224, %s225
      %p229 = pneg %p223
      %p230 = scmp.eq.s32.totalorder %s20, 1
      %p231 = por %p229, %p230
      %p232 = scmp.ne.s32.totalorder %s224, %s227
      %p233 = scmp.eq.s32.totalorder %s20, 0
      %p234 = por %p232, %p233
      %p235 = scmp.ne.s32.totalorder %s224, %s227
      %p236 = scmp.eq.s32.totalorder %s25, 1
      %p237 = por %p235, %p236
      %p238 = scmp.ne.s32.totalorder %s227, %s228
      %p239 = scmp.eq.s32.totalorder %s25, 0
      %p240 = por %p238, %p239
      %p241 = scmp.ne.s32.totalorder %s227, %s228
      %p242 = scmp.eq.s32.totalorder %s26, 1
      %p243 = por %p241, %p242
      %p245 = scmp.ne.s32.totalorder %s228, %s244
      %p246 = scmp.eq.s32.totalorder %s26, 0
      %p247 = por %p245, %p246
      %p248 = scmp.le.s32.totalorder 1, %s20
      %p249 = scmp.lt.s32.totalorder %s20, 3
      %p250 = pnand %p248, %p249
      %p251 = pneg %p250
      // Predicated region
      $region9: #{tpu_custom_call.1} parent=5 // pred_check
        _
      $region10: #{tpu_custom_call.1} parent=5 // pred_check_branch
        %253 = sbr.rel (%p250) target = $region12
      $region11: #{tpu_custom_call.1} parent=5 // pred_region
        %s254 = ssub.s32 %s20, 1
        // Predicated region
        $region13: #{tpu_custom_call.1} parent=11 // pred_check
          %p255 = pneg %p67
        $region14: #{tpu_custom_call.1} parent=11 // pred_check_branch
          %257 = sbr.rel (%p255) target = $region16
        $region15: #{tpu_custom_call.1} parent=11 // pred_region
          _
        $region16: #{tpu_custom_call.1} parent=11 // pred_fallthru
          _
        // Predicated region
        $region17: #{tpu_custom_call.1} parent=11 // pred_check
          %p258 = pneg %p88
        $region18: #{tpu_custom_call.1} parent=11 // pred_check_branch
          %260 = sbr.rel (%p258) target = $region20
        $region19: #{tpu_custom_call.1} parent=11 // pred_region
          _
        $region20: #{tpu_custom_call.1} parent=11 // pred_fallthru
          _
        // Predicated region
        $region21: #{tpu_custom_call.1} parent=11 // pred_check
          %p261 = pneg %p109
        $region22: #{tpu_custom_call.1} parent=11 // pred_check_branch
          %263 = sbr.rel (%p261) target = $region24
        $region23: #{tpu_custom_call.1} parent=11 // pred_region
          %s265 = ssub.s32 2048, 2048
          %266 = vsyncadd [#allocation3], %s265
          %s267 = sshll.u32 [#allocation2], 4
          %s268 = int_to_ptr.vmem [resolvable:$true] %s267
          %273 = dma.hbm_to_vmem [thread:$0]  %s3, 2048, %s268, [#allocation3], 128, 128, 8
        $region24: #{tpu_custom_call.1} parent=11 // pred_fallthru
          _
        // Predicated region
        $region25: #{tpu_custom_call.1} parent=11 // pred_check
          %p274 = pneg %p130
        $region26: #{tpu_custom_call.1} parent=11 // pred_check_branch
          %276 = sbr.rel (%p274) target = $region28
        $region27: #{tpu_custom_call.1} parent=11 // pred_region
          _
        $region28: #{tpu_custom_call.1} parent=11 // pred_fallthru
          _
        // Predicated region
        $region29: #{tpu_custom_call.1} parent=11 // pred_check
          %p277 = pneg %p151
        $region30: #{tpu_custom_call.1} parent=11 // pred_check_branch
          %279 = sbr.rel (%p277) target = $region32
        $region31: #{tpu_custom_call.1} parent=11 // pred_region
          %s281 = ssub.s32 2048, 2048
          %282 = vsyncadd [#allocation6], %s281
          %s283 = sshll.u32 [#allocation5], 4
          %s284 = int_to_ptr.vmem [resolvable:$true] %s283
          %289 = dma.hbm_to_vmem [thread:$0]  %s5, 2048, %s284, [#allocation6], 64, 64, 4
        $region32: #{tpu_custom_call.1} parent=11 // pred_fallthru
          _
        // Predicated region
        $region33: #{tpu_custom_call.1} parent=11 // pred_check
          %p290 = pneg %p172
        $region34: #{tpu_custom_call.1} parent=11 // pred_check_branch
          %292 = sbr.rel (%p290) target = $region36
        $region35: #{tpu_custom_call.1} parent=11 // pred_region
          _
        $region36: #{tpu_custom_call.1} parent=11 // pred_fallthru
          _
        // Predicated region
        $region37: #{tpu_custom_call.1} parent=11 // pred_check
          %p293 = pneg %p193
        $region38: #{tpu_custom_call.1} parent=11 // pred_check_branch
          %295 = sbr.rel (%p293) target = $region40
        $region39: #{tpu_custom_call.1} parent=11 // pred_region
          _
        $region40: #{tpu_custom_call.1} parent=11 // pred_fallthru
          _
        // Predicated region
        $region41: #{tpu_custom_call.1} parent=11 // pred_check
          %p296 = pneg %p214
        $region42: #{tpu_custom_call.1} parent=11 // pred_check_branch
          %298 = sbr.rel (%p296) target = $region44
        $region43: #{tpu_custom_call.1} parent=11 // pred_region
          _
        $region44: #{tpu_custom_call.1} parent=11 // pred_fallthru
          _
      $region12: #{tpu_custom_call.1} parent=5 // pred_fallthru
        _
      %p299 = scmp.lt.s32.totalorder %s20, 2
      // Predicated region
      $region45: #{tpu_custom_call.1} parent=5 // pred_check
        %p300 = pneg %p299
      $region46: #{tpu_custom_call.1} parent=5 // pred_check_branch
        %302 = sbr.rel (%p300) target = $region48
      $region47: #{tpu_custom_call.1} parent=5 // pred_region
        // Predicated region
        $region49: #{tpu_custom_call.1} parent=47 // pred_check
          %p303 = pneg %p40
        $region50: #{tpu_custom_call.1} parent=47 // pred_check_branch
          %305 = sbr.rel (%p303) target = $region52
        $region51: #{tpu_custom_call.1} parent=47 // pred_region
          %p306 = scmp.lt.s32.totalorder %s20, 1
          %s307 = scalar_select %p306, %s20, 1
          %s308 = smul.addr %s307, 8
          %s309 = scalar_lea.vmem %s0, %s308
        $region52: #{tpu_custom_call.1} parent=47 // pred_fallthru
          _
      $region48: #{tpu_custom_call.1} parent=5 // pred_fallthru
        _
      %p310 = scmp.le.s32.totalorder 1, %s20
      %p311 = scmp.lt.s32.totalorder %s20, 3
      %p312 = pnand %p310, %p311
      %p313 = pneg %p312
      // Predicated region
      $region53: #{tpu_custom_call.1} parent=5 // pred_check
        _
      $region54: #{tpu_custom_call.1} parent=5 // pred_check_branch
        %315 = sbr.rel (%p312) target = $region56
      $region55: #{tpu_custom_call.1} parent=5 // pred_region
        %s316 = ssub.s32 %s20, 1
        // Predicated region
        $region57: #{tpu_custom_call.1} parent=55 // pred_check
          %p317 = pneg %p109
        $region58: #{tpu_custom_call.1} parent=55 // pred_check_branch
          %319 = sbr.rel (%p317) target = $region60
        $region59: #{tpu_custom_call.1} parent=55 // pred_region
          %320 = dma.done [#allocation3], 2048
        $region60: #{tpu_custom_call.1} parent=55 // pred_fallthru
          _
        // Predicated region
        $region61: #{tpu_custom_call.1} parent=55 // pred_check
          %p321 = pneg %p151
        $region62: #{tpu_custom_call.1} parent=55 // pred_check_branch
          %323 = sbr.rel (%p321) target = $region64
        $region63: #{tpu_custom_call.1} parent=55 // pred_region
          %324 = dma.done [#allocation6], 2048
        $region64: #{tpu_custom_call.1} parent=55 // pred_fallthru
          _
        %p325 = scmp.lt.s32.totalorder %s25, 1
        %s326 = scalar_select %p325, %s25, 1
        %s327 = smul.addr %s326, 8
        %s328 = scalar_lea.vmem %s0, %s327
        %p329 = pneg %p46
        %p330 = pneg %p43
        %p331 = pneg %p67
        %p332 = pneg %p64
        %p333 = pneg %p88
        %p334 = pneg %p85
        %p335 = pneg %p109
        %p336 = pneg %p106
        %p337 = pneg %p130
        %p338 = pneg %p127
        %p339 = pneg %p151
        %p340 = pneg %p148
        %p341 = pneg %p172
        %p342 = pneg %p169
        %p343 = pneg %p193
        %p344 = pneg %p190
        %p345 = pneg %p214
        %p346 = pneg %p211
        %p347 = pneg %p240
        %p348 = pneg %p237
        %s349 = sand.u32 %s227, 1
        %s350 = scalar_lea.sflag [#allocation4], %s349
        %s351 = sand.u32 %s227, 1
        %s352 = smul.addr %s351, 4
        %s353 = scalar_lea.vmem [#allocation7], %s352
        %p354 = scmp.lt.s32.totalorder %s25, 1
        %s355 = scalar_select %p354, %s25, 1
        %s356 = smul.addr %s355, 8
        %s357 = scalar_lea.vmem %s0, %s356
        %v359 = vld [vmem:[%s357] sm:$0xff]
        %v360 = vpack.c.bf16 %v359, %v359
        %v361 = vld [vmem:[%s1] sm:$0xf]
        %v362 = vld [vmem:[%s1 + $0x4] sm:$0xf]
        %v363 = vld [vmem:[%s1 + $0x8] sm:$0xf]
        %v364 = vld [vmem:[%s1 + $0xc] sm:$0xf]
        %v365 = vld [vmem:[%s1 + $0x10] sm:$0xf]
        %v366 = vld [vmem:[%s1 + $0x14] sm:$0xf]
        %v367 = vld [vmem:[%s1 + $0x18] sm:$0x1]
        %v368 = vld [vmem:[%s2] sm:$0x1]
        %v370 = vlaneseq
        %v371 = vshrl.u32 %v370, 7
        %v372 = vsub.s32 0, %v371
        %v373 = vrot.slane %v368, %v372
        %v382 = vunpack.c.l.b16 %v361
        %v383 = vunpack.c.l.b16 %v362
        %v384 = vunpack.c.l.b16 %v363
        %v385 = vunpack.c.l.b16 %v364
        %v386 = vunpack.c.l.b16 %v365
        %v387 = vunpack.c.l.b16 %v366
        %v388 = vunpack.c.l.b16 %v367
        %v389 = vpack.c.b16 %v383, %v382
        %v390 = vpack.c.b16 %v385, %v384
        %v391 = vpack.c.b16 %v387, %v386
        %v392 = vpack.c.b16 %v388, %v388
        %vm396 = vcmask 408576
        %v398 = vsel %vm396, %v360, 0
        %vm400 = vcmask 1040384
        %v402 = vsel %vm400, %v392, 0
        %404 = vmatprep.subr.bf16.mxu0 0
        %405 = vmatpush1.bf16.msra.mxu0 %v389
        %406 = vmatprep.subr.bf16.mxu0 0
        %407 = vmatpush1.bf16.msra.mxu0 %v390
        %408 = vmatprep.subr.bf16.mxu0 0
        %409 = vmatpush1.bf16.msra.mxu0 %v391
        %410 = vmatprep.subr.bf16.mxu0 0
        %411 = vmatpush1.bf16.msra.mxu0 %v402
        %412 = vmatprep.subr.bf16.mxu0 0
        %413 = vmatpush1.bf16.msra.mxu0 0
        %414 = vmatprep.subr.bf16.mxu0 0
        %415 = vmatpush1.bf16.msra.mxu0 0
        %416 = vmatprep.subr.bf16.mxu0 0
        %417 = vmatpush1.bf16.msra.mxu0 0
        %418 = vmatprep.subr.bf16.mxu0 0
        %419 = vmatpush1.bf16.msra.mxu0 0
        %420 = vmatprep.subr.bf16.mxu0 0
        %421 = vmatpush1.bf16.msra.mxu0 0
        %422 = vmatprep.subr.bf16.mxu0 0
        %423 = vmatpush1.bf16.msra.mxu0 0
        %424 = vmatprep.subr.bf16.mxu0 0
        %425 = vmatpush1.bf16.msra.mxu0 0
        %426 = vmatprep.subr.bf16.mxu0 0
        %427 = vmatpush1.bf16.msra.mxu0 0
        %428 = vmatprep.subr.bf16.mxu0 0
        %429 = vmatpush1.bf16.msra.mxu0 0
        %430 = vmatprep.subr.bf16.mxu0 0
        %431 = vmatpush1.bf16.msra.mxu0 0
        %432 = vmatprep.subr.bf16.mxu0 0
        %433 = vmatpush1.bf16.msra.mxu0 0
        %434 = vmatprep.subr.bf16.mxu0 0
        %435 = vmatpush1.bf16.msra.mxu0 0
        %436 = vmatprep.mubr.bf16.mxu0 0
        %437 = vmatmul.mubr.bf16.gmra.mrb[0].mxu0 %v398
        %v438 = vpop.f32.mrb[0].mxu0
        %v439 = vadd.f32 %v373, %v438
        %v440 = vpop.f32.mrb[0].mxu0
        %v441 = vpop.f32.mrb[0].mxu0
        %v442 = vpop.f32.mrb[0].mxu0
        %443 = vdwg.mxu0
        %v444 = vtanh.pop %v439
        %v445 = vpack.c.bf16 %v444, %v444
        %v446 = vld [vmem:[#allocation2] sm:$0xff]
        %v447 = vld [vmem:[#allocation2 + $0x8] sm:$0xff]
        %v448 = vld [vmem:[#allocation2 + $0x10] sm:$0xff]
        %v449 = vld [vmem:[#allocation2 + $0x18] sm:$0xff]
        %v450 = vld [vmem:[#allocation2 + $0x20] sm:$0xff]
        %v451 = vld [vmem:[#allocation2 + $0x28] sm:$0xff]
        %v452 = vld [vmem:[#allocation2 + $0x30] sm:$0xff]
        %v453 = vld [vmem:[#allocation2 + $0x38] sm:$0xff]
        %v454 = vld [vmem:[#allocation2 + $0x40] sm:$0xff]
        %v455 = vld [vmem:[#allocation2 + $0x48] sm:$0xff]
        %v456 = vld [vmem:[#allocation2 + $0x50] sm:$0xff]
        %v457 = vld [vmem:[#allocation2 + $0x58] sm:$0xff]
        %v458 = vld [vmem:[#allocation2 + $0x60] sm:$0xff]
        %v459 = vld [vmem:[#allocation2 + $0x68] sm:$0xff]
        %v460 = vld [vmem:[#allocation2 + $0x70] sm:$0xff]
        %v461 = vld [vmem:[#allocation2 + $0x78] sm:$0xff]
        %v462 = vld [vmem:[%s4] sm:$0x3]
        %v464 = vlaneseq
        %v465 = vshrl.u32 %v464, 7
        %v466 = vsub.s32 0, %v465
        %v467 = vrot.slane %v462, %v466
        %v468 = vlaneseq
        %v469 = vshrl.u32 %v468, 7
        %v470 = vsub.s32 1, %v469
        %v471 = vrot.slane %v462, %v470
        %v490 = vunpack.c.l.b16 %v446
        %v491 = vunpack.c.h.b16 %v446
        %v492 = vunpack.c.l.b16 %v447
        %v493 = vunpack.c.h.b16 %v447
        %v494 = vunpack.c.l.b16 %v448
        %v495 = vunpack.c.h.b16 %v448
        %v496 = vunpack.c.l.b16 %v449
        %v497 = vunpack.c.h.b16 %v449
        %v498 = vunpack.c.l.b16 %v450
        %v499 = vunpack.c.h.b16 %v450
        %v500 = vunpack.c.l.b16 %v451
        %v501 = vunpack.c.h.b16 %v451
        %v502 = vunpack.c.l.b16 %v452
        %v503 = vunpack.c.h.b16 %v452
        %v504 = vunpack.c.l.b16 %v453
        %v505 = vunpack.c.h.b16 %v453
        %v506 = vunpack.c.l.b16 %v454
        %v507 = vunpack.c.h.b16 %v454
        %v508 = vunpack.c.l.b16 %v455
        %v509 = vunpack.c.h.b16 %v455
        %v510 = vunpack.c.l.b16 %v456
        %v511 = vunpack.c.h.b16 %v456
        %v512 = vunpack.c.l.b16 %v457
        %v513 = vunpack.c.h.b16 %v457
        %v514 = vunpack.c.l.b16 %v458
        %v515 = vunpack.c.h.b16 %v458
        %v516 = vunpack.c.l.b16 %v459
        %v517 = vunpack.c.h.b16 %v459
        %v518 = vunpack.c.l.b16 %v460
        %v519 = vunpack.c.h.b16 %v460
        %v520 = vunpack.c.l.b16 %v461
        %v521 = vunpack.c.h.b16 %v461
        %v522 = vpack.c.b16 %v492, %v490
        %v523 = vpack.c.b16 %v493, %v491
        %v524 = vpack.c.b16 %v496, %v494
        %v525 = vpack.c.b16 %v497, %v495
        %v526 = vpack.c.b16 %v500, %v498
        %v527 = vpack.c.b16 %v501, %v499
        %v528 = vpack.c.b16 %v504, %v502
        %v529 = vpack.c.b16 %v505, %v503
        %v530 = vpack.c.b16 %v508, %v506
        %v531 = vpack.c.b16 %v509, %v507
        %v532 = vpack.c.b16 %v512, %v510
        %v533 = vpack.c.b16 %v513, %v511
        %v534 = vpack.c.b16 %v516, %v514
        %v535 = vpack.c.b16 %v517, %v515
        %v536 = vpack.c.b16 %v520, %v518
        %v537 = vpack.c.b16 %v521, %v519
        %554 = vmatprep.subr.bf16.mxu0 %v523
        %555 = vmatpush1.bf16.msra.mxu0 %v522
        %556 = vmatprep.subr.bf16.mxu0 %v525
        %557 = vmatpush1.bf16.msra.mxu0 %v524
        %558 = vmatprep.subr.bf16.mxu0 %v527
        %559 = vmatpush1.bf16.msra.mxu0 %v526
        %560 = vmatprep.subr.bf16.mxu0 %v529
        %561 = vmatpush1.bf16.msra.mxu0 %v528
        %562 = vmatprep.subr.bf16.mxu0 %v531
        %563 = vmatpush1.bf16.msra.mxu0 %v530
        %564 = vmatprep.subr.bf16.mxu0 %v533
        %565 = vmatpush1.bf16.msra.mxu0 %v532
        %566 = vmatprep.subr.bf16.mxu0 %v535
        %567 = vmatpush1.bf16.msra.mxu0 %v534
        %568 = vmatprep.subr.bf16.mxu0 %v537
        %569 = vmatpush1.bf16.msra.mxu0 %v536
        %570 = vmatprep.subr.bf16.mxu0 0
        %571 = vmatpush1.bf16.msra.mxu0 0
        %572 = vmatprep.subr.bf16.mxu0 0
        %573 = vmatpush1.bf16.msra.mxu0 0
        %574 = vmatprep.subr.bf16.mxu0 0
        %575 = vmatpush1.bf16.msra.mxu0 0
        %576 = vmatprep.subr.bf16.mxu0 0
        %577 = vmatpush1.bf16.msra.mxu0 0
        %578 = vmatprep.subr.bf16.mxu0 0
        %579 = vmatpush1.bf16.msra.mxu0 0
        %580 = vmatprep.subr.bf16.mxu0 0
        %581 = vmatpush1.bf16.msra.mxu0 0
        %582 = vmatprep.subr.bf16.mxu0 0
        %583 = vmatpush1.bf16.msra.mxu0 0
        %584 = vmatprep.subr.bf16.mxu0 0
        %585 = vmatpush1.bf16.msra.mxu0 0
        %586 = vmatprep.mubr.bf16.mxu0 0
        %587 = vmatmul.mubr.bf16.gmra.mrb[0].mxu0 %v445
        %v588 = vpop.f32.mrb[0].mxu0
        %v589 = vadd.f32 %v467, %v588
        %v590 = vpop.f32.mrb[0].mxu0
        %v591 = vadd.f32 %v471, %v590
        %v592 = vpop.f32.mrb[0].mxu0
        %v593 = vpop.f32.mrb[0].mxu0
        %594 = vdwg.mxu0
        %v595 = vtanh.pop %v589
        %v596 = vtanh.pop %v591
        %v597 = vpack.c.bf16 %v595, %v595
        %v598 = vpack.c.bf16 %v596, %v596
        %v599 = vld [vmem:[#allocation5] sm:$0xf]
        %v600 = vld [vmem:[#allocation5 + $0x4] sm:$0xf]
        %v601 = vld [vmem:[#allocation5 + $0x8] sm:$0xf]
        %v602 = vld [vmem:[#allocation5 + $0xc] sm:$0xf]
        %v603 = vld [vmem:[#allocation5 + $0x10] sm:$0xf]
        %v604 = vld [vmem:[#allocation5 + $0x14] sm:$0xf]
        %v605 = vld [vmem:[#allocation5 + $0x18] sm:$0xf]
        %v606 = vld [vmem:[#allocation5 + $0x1c] sm:$0xf]
        %v607 = vld [vmem:[#allocation5 + $0x20] sm:$0xf]
        %v608 = vld [vmem:[#allocation5 + $0x24] sm:$0xf]
        %v609 = vld [vmem:[#allocation5 + $0x28] sm:$0xf]
        %v610 = vld [vmem:[#allocation5 + $0x2c] sm:$0xf]
        %v611 = vld [vmem:[#allocation5 + $0x30] sm:$0xf]
        %v612 = vld [vmem:[#allocation5 + $0x34] sm:$0xf]
        %v613 = vld [vmem:[#allocation5 + $0x38] sm:$0xf]
        %v614 = vld [vmem:[#allocation5 + $0x3c] sm:$0xf]
        %v615 = vld [vmem:[#allocation5 + $0x40] sm:$0xf]
        %v616 = vld [vmem:[#allocation5 + $0x44] sm:$0xf]
        %v617 = vld [vmem:[#allocation5 + $0x48] sm:$0xf]
        %v618 = vld [vmem:[#allocation5 + $0x4c] sm:$0xf]
        %v619 = vld [vmem:[#allocation5 + $0x50] sm:$0xf]
        %v620 = vld [vmem:[#allocation5 + $0x54] sm:$0xf]
        %v621 = vld [vmem:[#allocation5 + $0x58] sm:$0xf]
        %v622 = vld [vmem:[#allocation5 + $0x5c] sm:$0xf]
        %v623 = vld [vmem:[#allocation5 + $0x60] sm:$0xf]
        %v624 = vld [vmem:[#allocation5 + $0x64] sm:$0xf]
        %v625 = vld [vmem:[#allocation5 + $0x68] sm:$0xf]
        %v626 = vld [vmem:[#allocation5 + $0x6c] sm:$0xf]
        %v627 = vld [vmem:[#allocation5 + $0x70] sm:$0xf]
        %v628 = vld [vmem:[#allocation5 + $0x74] sm:$0xf]
        %v629 = vld [vmem:[#allocation5 + $0x78] sm:$0xf]
        %v630 = vld [vmem:[#allocation5 + $0x7c] sm:$0xf]
        %v631 = vld [vmem:[%s6] sm:$0x1]
        %v633 = vlaneseq
        %v634 = vshrl.u32 %v633, 7
        %v635 = vsub.s32 0, %v634
        %v636 = vrot.slane %v631, %v635
        %v670 = vunpack.c.l.b16 %v599
        %v671 = vunpack.c.l.b16 %v600
        %v672 = vunpack.c.l.b16 %v601
        %v673 = vunpack.c.l.b16 %v602
        %v674 = vunpack.c.l.b16 %v603
        %v675 = vunpack.c.l.b16 %v604
        %v676 = vunpack.c.l.b16 %v605
        %v677 = vunpack.c.l.b16 %v606
        %v678 = vunpack.c.l.b16 %v607
        %v679 = vunpack.c.l.b16 %v608
        %v680 = vunpack.c.l.b16 %v609
        %v681 = vunpack.c.l.b16 %v610
        %v682 = vunpack.c.l.b16 %v611
        %v683 = vunpack.c.l.b16 %v612
        %v684 = vunpack.c.l.b16 %v613
        %v685 = vunpack.c.l.b16 %v614
        %v686 = vunpack.c.l.b16 %v615
        %v687 = vunpack.c.l.b16 %v616
        %v688 = vunpack.c.l.b16 %v617
        %v689 = vunpack.c.l.b16 %v618
        %v690 = vunpack.c.l.b16 %v619
        %v691 = vunpack.c.l.b16 %v620
        %v692 = vunpack.c.l.b16 %v621
        %v693 = vunpack.c.l.b16 %v622
        %v694 = vunpack.c.l.b16 %v623
        %v695 = vunpack.c.l.b16 %v624
        %v696 = vunpack.c.l.b16 %v625
        %v697 = vunpack.c.l.b16 %v626
        %v698 = vunpack.c.l.b16 %v627
        %v699 = vunpack.c.l.b16 %v628
        %v700 = vunpack.c.l.b16 %v629
        %v701 = vunpack.c.l.b16 %v630
        %v702 = vpack.c.b16 %v671, %v670
        %v703 = vpack.c.b16 %v673, %v672
        %v704 = vpack.c.b16 %v675, %v674
        %v705 = vpack.c.b16 %v677, %v676
        %v706 = vpack.c.b16 %v679, %v678
        %v707 = vpack.c.b16 %v681, %v680
        %v708 = vpack.c.b16 %v683, %v682
        %v709 = vpack.c.b16 %v685, %v684
        %v710 = vpack.c.b16 %v687, %v686
        %v711 = vpack.c.b16 %v689, %v688
        %v712 = vpack.c.b16 %v691, %v690
        %v713 = vpack.c.b16 %v693, %v692
        %v714 = vpack.c.b16 %v695, %v694
        %v715 = vpack.c.b16 %v697, %v696
        %v716 = vpack.c.b16 %v699, %v698
        %v717 = vpack.c.b16 %v701, %v700
        %734 = vmatprep.subr.bf16.mxu0 0
        %735 = vmatpush1.bf16.msra.mxu0 %v702
        %736 = vmatprep.subr.bf16.mxu0 0
        %737 = vmatpush1.bf16.msra.mxu0 %v703
        %738 = vmatprep.subr.bf16.mxu0 0
        %739 = vmatpush1.bf16.msra.mxu0 %v704
        %740 = vmatprep.subr.bf16.mxu0 0
        %741 = vmatpush1.bf16.msra.mxu0 %v705
        %742 = vmatprep.subr.bf16.mxu0 0
        %743 = vmatpush1.bf16.msra.mxu0 %v706
        %744 = vmatprep.subr.bf16.mxu0 0
        %745 = vmatpush1.bf16.msra.mxu0 %v707
        %746 = vmatprep.subr.bf16.mxu0 0
        %747 = vmatpush1.bf16.msra.mxu0 %v708
        %748 = vmatprep.subr.bf16.mxu0 0
        %749 = vmatpush1.bf16.msra.mxu0 %v709
        %750 = vmatprep.subr.bf16.mxu0 0
        %751 = vmatpush1.bf16.msra.mxu0 %v710
        %752 = vmatprep.subr.bf16.mxu0 0
        %753 = vmatpush1.bf16.msra.mxu0 %v711
        %754 = vmatprep.subr.bf16.mxu0 0
        %755 = vmatpush1.bf16.msra.mxu0 %v712
        %756 = vmatprep.subr.bf16.mxu0 0
        %757 = vmatpush1.bf16.msra.mxu0 %v713
        %758 = vmatprep.subr.bf16.mxu0 0
        %759 = vmatpush1.bf16.msra.mxu0 %v714
        %760 = vmatprep.subr.bf16.mxu0 0
        %761 = vmatpush1.bf16.msra.mxu0 %v715
        %762 = vmatprep.subr.bf16.mxu0 0
        %763 = vmatpush1.bf16.msra.mxu0 %v716
        %764 = vmatprep.subr.bf16.mxu0 0
        %765 = vmatpush1.bf16.msra.mxu0 %v717
        %766 = vmatprep.mubr.bf16.mxu0 %v598
        %767 = vmatmul.mubr.bf16.gmra.mrb[0].mxu0 %v597
        %v768 = vpop.f32.mrb[0].mxu0
        %v769 = vadd.f32 %v636, %v768
        %v770 = vpop.f32.mrb[0].mxu0
        %v771 = vpop.f32.mrb[0].mxu0
        %v772 = vpop.f32.mrb[0].mxu0
        %773 = vdwg.mxu0
        %v774 = vtanh.pop %v769
        %v775 = vpack.c.bf16 %v774, %v774
        %v776 = vld [vmem:[%s7] sm:$0xf]
        %v777 = vld [vmem:[%s7 + $0x4] sm:$0xf]
        %v778 = vld [vmem:[%s7 + $0x8] sm:$0xf]
        %v779 = vld [vmem:[%s7 + $0xc] sm:$0xf]
        %v780 = vld [vmem:[%s7 + $0x10] sm:$0xf]
        %v781 = vld [vmem:[%s7 + $0x14] sm:$0xf]
        %v782 = vld [vmem:[%s7 + $0x18] sm:$0xf]
        %v783 = vld [vmem:[%s7 + $0x1c] sm:$0xf]
        %v784 = vld [vmem:[%s7 + $0x20] sm:$0xf]
        %v785 = vld [vmem:[%s7 + $0x24] sm:$0xf]
        %v786 = vld [vmem:[%s7 + $0x28] sm:$0xf]
        %v787 = vld [vmem:[%s7 + $0x2c] sm:$0xf]
        %v788 = vld [vmem:[%s7 + $0x30] sm:$0xf]
        %v789 = vld [vmem:[%s7 + $0x34] sm:$0xf]
        %v790 = vld [vmem:[%s7 + $0x38] sm:$0xf]
        %v791 = vld [vmem:[%s7 + $0x3c] sm:$0xf]
        %v792 = vld [vmem:[%s8] sm:$0x1]
        %v794 = vlaneseq
        %v795 = vshrl.u32 %v794, 7
        %v796 = vsub.s32 0, %v795
        %v797 = vrot.slane %v792, %v796
        %v815 = vunpack.c.l.b16 %v776
        %v816 = vunpack.c.l.b16 %v777
        %v817 = vunpack.c.l.b16 %v778
        %v818 = vunpack.c.l.b16 %v779
        %v819 = vunpack.c.l.b16 %v780
        %v820 = vunpack.c.l.b16 %v781
        %v821 = vunpack.c.l.b16 %v782
        %v822 = vunpack.c.l.b16 %v783
        %v823 = vunpack.c.l.b16 %v784
        %v824 = vunpack.c.l.b16 %v785
        %v825 = vunpack.c.l.b16 %v786
        %v826 = vunpack.c.l.b16 %v787
        %v827 = vunpack.c.l.b16 %v788
        %v828 = vunpack.c.l.b16 %v789
        %v829 = vunpack.c.l.b16 %v790
        %v830 = vunpack.c.l.b16 %v791
        %v831 = vpack.c.b16 %v816, %v815
        %v832 = vpack.c.b16 %v818, %v817
        %v833 = vpack.c.b16 %v820, %v819
        %v834 = vpack.c.b16 %v822, %v821
        %v835 = vpack.c.b16 %v824, %v823
        %v836 = vpack.c.b16 %v826, %v825
        %v837 = vpack.c.b16 %v828, %v827
        %v838 = vpack.c.b16 %v830, %v829
        %847 = vmatprep.subr.bf16.mxu0 0
        %848 = vmatpush1.bf16.msra.mxu0 %v831
        %849 = vmatprep.subr.bf16.mxu0 0
        %850 = vmatpush1.bf16.msra.mxu0 %v832
        %851 = vmatprep.subr.bf16.mxu0 0
        %852 = vmatpush1.bf16.msra.mxu0 %v833
        %853 = vmatprep.subr.bf16.mxu0 0
        %854 = vmatpush1.bf16.msra.mxu0 %v834
        %855 = vmatprep.subr.bf16.mxu0 0
        %856 = vmatpush1.bf16.msra.mxu0 %v835
        %857 = vmatprep.subr.bf16.mxu0 0
        %858 = vmatpush1.bf16.msra.mxu0 %v836
        %859 = vmatprep.subr.bf16.mxu0 0
        %860 = vmatpush1.bf16.msra.mxu0 %v837
        %861 = vmatprep.subr.bf16.mxu0 0
        %862 = vmatpush1.bf16.msra.mxu0 %v838
        %863 = vmatprep.subr.bf16.mxu0 0
        %864 = vmatpush1.bf16.msra.mxu0 0
        %865 = vmatprep.subr.bf16.mxu0 0
        %866 = vmatpush1.bf16.msra.mxu0 0
        %867 = vmatprep.subr.bf16.mxu0 0
        %868 = vmatpush1.bf16.msra.mxu0 0
        %869 = vmatprep.subr.bf16.mxu0 0
        %870 = vmatpush1.bf16.msra.mxu0 0
        %871 = vmatprep.subr.bf16.mxu0 0
        %872 = vmatpush1.bf16.msra.mxu0 0
        %873 = vmatprep.subr.bf16.mxu0 0
        %874 = vmatpush1.bf16.msra.mxu0 0
        %875 = vmatprep.subr.bf16.mxu0 0
        %876 = vmatpush1.bf16.msra.mxu0 0
        %877 = vmatprep.subr.bf16.mxu0 0
        %878 = vmatpush1.bf16.msra.mxu0 0
        %879 = vmatprep.mubr.bf16.mxu0 0
        %880 = vmatmul.mubr.bf16.gmra.mrb[0].mxu0 %v775
        %v881 = vpop.f32.mrb[0].mxu0
        %v882 = vadd.f32 %v797, %v881
        %v883 = vpop.f32.mrb[0].mxu0
        %v884 = vpop.f32.mrb[0].mxu0
        %v885 = vpop.f32.mrb[0].mxu0
        %886 = vdwg.mxu0
        %v887 = vtanh.pop %v882
        %v888 = vpack.c.bf16 %v887, %v887
        %vm889 = vcmask 404480
        %890 = vst.msk [vmem:[%s353] sm:$0xf] %vm889, %v888
        %s891 = sand.u32 %s227, 1
        %s892 = scalar_lea.sflag [#allocation4], %s891
        %s893 = sand.u32 %s227, 1
        %s894 = smul.addr %s893, 4
        %s895 = scalar_lea.vmem [#allocation7], %s894
        // Predicated region
        $region65: #{tpu_custom_call.1} parent=55 // pred_check
          %p896 = pneg %p237
        $region66: #{tpu_custom_call.1} parent=55 // pred_check_branch
          %898 = sbr.rel (%p896) target = $region68
        $region67: #{tpu_custom_call.1} parent=55 // pred_region
          %s900 = ssub.s32 64, 64
          %901 = vsyncadd %s892, %s900
          %s902 = smul.addr %s25, 64
          %s903 = scalar_lea.hbm %s9, %s902
          %s905 = sshll.u32 %s895, 4
          %s906 = int_to_ptr.vmem [resolvable:$true] %s905
          %908 = dma.vmem_to_hbm [thread:$0]  %s906, 64, %s903, %s892
        $region68: #{tpu_custom_call.1} parent=55 // pred_fallthru
          _
      $region56: #{tpu_custom_call.1} parent=5 // pred_fallthru
        _
      %p909 = scmp.le.s32.totalorder 2, %s20
      // Predicated region
      $region69: #{tpu_custom_call.1} parent=5 // pred_check
        %p910 = pneg %p909
      $region70: #{tpu_custom_call.1} parent=5 // pred_check_branch
        %912 = sbr.rel (%p910) target = $region72
      $region71: #{tpu_custom_call.1} parent=5 // pred_region
        %s913 = ssub.s32 %s20, 2
        // Predicated region
        $region73: #{tpu_custom_call.1} parent=71 // pred_check
          %p914 = pneg %p243
        $region74: #{tpu_custom_call.1} parent=71 // pred_check_branch
          %916 = sbr.rel (%p914) target = $region76
        $region75: #{tpu_custom_call.1} parent=71 // pred_region
          %s917 = sand.u32 %s228, 1
          %s918 = scalar_lea.sflag [#allocation4], %s917
          %s919 = sand.u32 %s228, 1
          %s920 = smul.addr %s919, 4
          %s921 = scalar_lea.vmem [#allocation7], %s920
          %922 = dma.done %s918, 64
        $region76: #{tpu_custom_call.1} parent=71 // pred_fallthru
          _
      $region72: #{tpu_custom_call.1} parent=5 // pred_fallthru
        _
    $region6: #{tpu_custom_call.1} parent=1 // loop_footer
      %s24 = sadd.s32 1, %s20
    $region7: #{tpu_custom_call.1} parent=1 // loop_footer_branch
      %19 = sbr.rel target = $region3
    $region8: #{tpu_custom_call.1} parent=1 // loop_exit
      _
    %923 = vsyncpa [#allocation3], 1
    %s924 = scalar_lea.sflag [#allocation3], 1
    %925 = vsyncpa %s924, 1
    %926 = vsyncpa [#allocation6], 1
    %927 = vsyncpa [#allocation4], 1
    %s928 = scalar_lea.sflag [#allocation4], 1
    %929 = vsyncpa %s928, 1

</llo_original>
